<compile_context>
chip_gen: v5e
topology: v5e:2x2
jax: 0.10.0
libtpu: 0.0.40
codegen_flags: <defaults>
</compile_context>

<pallas_src>
import functools

import jax
import jax.numpy as jnp
from jax.experimental import pallas as pl
from jax.experimental.pallas import tpu as pltpu


def _round_up(x, m):
    return ((x + m - 1) // m) * m


def _mlp_kernel(x_ref, w1_ref, b1_ref, w2_ref, b2_ref, o_ref, acc_ref):
    """Grid = (row_tiles, hidden_tiles); hidden axis is a reduction."""
    k = pl.program_id(1)

    @pl.when(k == 0)
    def _():
        acc_ref[...] = jnp.zeros_like(acc_ref)

    # First linear (MXU, f32 accumulation) + bias + ReLU in f32.
    h = jnp.dot(x_ref[...], w1_ref[...], preferred_element_type=jnp.float32)
    h = jnp.maximum(h + b1_ref[...], 0.0)

    # Second linear on this hidden slice, accumulated into f32 scratch.
    acc_ref[...] += jnp.dot(h.astype(w2_ref.dtype), w2_ref[...],
                            preferred_element_type=jnp.float32)

    @pl.when(k == pl.num_programs(1) - 1)
    def _():
        o_ref[...] = (acc_ref[...] + b2_ref[...]).astype(o_ref.dtype)


@functools.partial(
    jax.jit, static_argnames=("block_rows", "block_hidden", "compute_dtype"))
def mlp_forward(x, w1, b1, w2, b2, *, block_rows=256, block_hidden=512,
                compute_dtype=None):
    """Fused MLP forward: relu(x @ w1 + b1) @ w2 + b2.

    x:  [N, C_in]
    w1: [C_in, H]   b1: [1, H]
    w2: [H, C_out]  b2: [1, C_out]
    compute_dtype: dtype of matmul operands (e.g. jnp.bfloat16); accumulation
                   stays f32 and the output keeps x.dtype.
    """
    n, c_in = x.shape
    hidden = w1.shape[1]
    c_out = w2.shape[1]

    out_dtype = x.dtype
    if compute_dtype is None:
        compute_dtype = x.dtype
    csize = jnp.dtype(compute_dtype).itemsize
    osize = jnp.dtype(out_dtype).itemsize

    # Sublane granularity: 8 rows for 32-bit, 16 for 16-bit, 32 for 8-bit.
    row_mult = (8 * 4) // csize

    # Lane-dense padding (128 on the lane axis). Zero padding is exact for
    # this MLP: padded hidden units produce relu(0) = 0 and padded w2 rows
    # are 0, so they contribute nothing; padded rows/cols are sliced away.
    n_pad = _round_up(n, row_mult)
    cin_pad = _round_up(c_in, 128)
    h_pad = _round_up(hidden, 128)
    cout_pad = _round_up(c_out, 128)

    block_rows = min(_round_up(block_rows, row_mult), n_pad)
    block_hidden = min(_round_up(block_hidden, 128), h_pad)

    xp = jnp.pad(x, ((0, n_pad - n), (0, cin_pad - c_in))).astype(compute_dtype)
    w1p = jnp.pad(w1, ((0, cin_pad - c_in), (0, h_pad - hidden))).astype(compute_dtype)
    b1p = jnp.pad(b1, ((0, 0), (0, h_pad - hidden))).astype(jnp.float32)
    w2p = jnp.pad(w2, ((0, h_pad - hidden), (0, cout_pad - c_out))).astype(compute_dtype)
    b2p = jnp.pad(b2, ((0, 0), (0, cout_pad - c_out))).astype(jnp.float32)

    grid = (pl.cdiv(n_pad, block_rows), pl.cdiv(h_pad, block_hidden))

    flops = 2 * n_pad * (cin_pad * h_pad + h_pad * cout_pad)
    bytes_accessed = (n_pad * cin_pad * csize          # x
                      + cin_pad * h_pad * csize        # w1
                      + h_pad * cout_pad * csize       # w2
                      + (h_pad + cout_pad) * 4         # biases
                      + n_pad * cout_pad * osize)      # out

    out_padded = pl.pallas_call(
        _mlp_kernel,
        out_shape=jax.ShapeDtypeStruct((n_pad, cout_pad), out_dtype),
        grid_spec=pltpu.PrefetchScalarGridSpec(
            num_scalar_prefetch=0,
            grid=grid,
            in_specs=[
                pl.BlockSpec((block_rows, cin_pad), lambda i, k: (i, 0)),     # x tile
                pl.BlockSpec((cin_pad, block_hidden), lambda i, k: (0, k)),   # w1 slice
                pl.BlockSpec((1, block_hidden), lambda i, k: (0, k)),         # b1 slice
                pl.BlockSpec((block_hidden, cout_pad), lambda i, k: (k, 0)),  # w2 slice
                pl.BlockSpec((1, cout_pad), lambda i, k: (0, 0)),             # b2
            ],
            out_specs=pl.BlockSpec((block_rows, cout_pad), lambda i, k: (i, 0)),
            scratch_shapes=[pltpu.VMEM((block_rows, cout_pad), jnp.float32)],
        ),
        compiler_params=pltpu.CompilerParams(
            dimension_semantics=("parallel", "arbitrary"),
            vmem_limit_bytes=64 * 1024 * 1024,
        ),
        cost_estimate=pl.CostEstimate(
            flops=int(flops), transcendentals=0,
            bytes_accessed=int(bytes_accessed)),
    )(xp, w1p, b1p, w2p, b2p)

    return out_padded[:n, :c_out]


def init_mlp_params(key, in_channels, hidden_channels, out_channels,
                    dtype=jnp.float32):
    """Deterministic init mimicking nn.Linear's uniform(-1/sqrt(fan_in), ...)."""
    k1, k2, k3, k4 = jax.random.split(key, 4)
    bound1 = 1.0 / (in_channels ** 0.5)
    bound2 = 1.0 / (hidden_channels ** 0.5)
    # Stored pre-transposed relative to torch: [in, out] instead of [out, in].
    w1 = jax.random.uniform(k1, (in_channels, hidden_channels),
                            dtype, -bound1, bound1)
    b1 = jax.random.uniform(k2, (1, hidden_channels), dtype, -bound1, bound1)
    w2 = jax.random.uniform(k3, (hidden_channels, out_channels),
                            dtype, -bound2, bound2)
    b2 = jax.random.uniform(k4, (1, out_channels), dtype, -bound2, bound2)
    return w1, b1, w2, b2


if __name__ == "__main__":
    key = jax.random.PRNGKey(0)
    kx, kp, kx2, kp2 = jax.random.split(key, 4)

    # --- Small shapes consistent with the module's forward (f32 path). ---
    N, C_IN, HIDDEN, C_OUT = 16, 32, 64, 8
    x = jax.random.normal(kx, (N, C_IN), jnp.float32)
    w1, b1, w2, b2 = init_mlp_params(kp, C_IN, HIDDEN, C_OUT)

    out = jax.block_until_ready(mlp_forward(x, w1, b1, w2, b2))
    ref = jnp.maximum(x @ w1 + b1, 0.0) @ w2 + b2
    assert out.shape == (N, C_OUT)
    assert jnp.allclose(out, ref, atol=1e-5, rtol=1e-5)

    # --- Larger shapes: multi-step row grid, hidden-axis accumulation, bf16
    #     matmul operands with f32 accumulation (loose tolerance). ---
    N2, C2_IN, H2, C2_OUT = 1024, 256, 512, 128
    x2 = jax.random.normal(kx2, (N2, C2_IN), jnp.float32)
    p2 = init_mlp_params(kp2, C2_IN, H2, C2_OUT)
    out2 = jax.block_until_ready(
        mlp_forward(x2, *p2, block_rows=256, block_hidden=256,
                    compute_dtype=jnp.bfloat16))
    ref2 = jnp.maximum(x2 @ p2[0] + p2[1], 0.0) @ p2[2] + p2[3]
    assert out2.shape == (N2, C2_OUT)
    assert jnp.allclose(out2, ref2, atol=5e-2, rtol=5e-2)

    print("KERNEL_OK")
</pallas_src>

<mosaic_0001>
module attributes {stable_mosaic.version = 11 : i64} {
  func.func @_mlp_kernel(%arg0: i32, %arg1: i32, %arg2: memref<16x128xf32, #tpu.memory_space<vmem>>, %arg3: memref<128x128xf32, #tpu.memory_space<vmem>>, %arg4: memref<1x128xf32, #tpu.memory_space<vmem>>, %arg5: memref<128x128xf32, #tpu.memory_space<vmem>>, %arg6: memref<1x128xf32, #tpu.memory_space<vmem>>, %arg7: memref<16x128xf32, #tpu.memory_space<vmem>>, %arg8: memref<16x128xf32, #tpu.memory_space<vmem>>) attributes {dimension_semantics = [#tpu.dimension_semantics<parallel>, #tpu.dimension_semantics<arbitrary>], iteration_bounds = array<i64: 1, 1>, scalar_prefetch = 0 : i64, scratch_operands = 1 : i64, tpu.core_type = #tpu.core_type<tc>, window_params = [{transform_indices = @transform_0, window_bounds = array<i64: 16, 128>}, {transform_indices = @transform_1, window_bounds = array<i64: 128, 128>}, {transform_indices = @transform_2, window_bounds = array<i64: 1, 128>}, {transform_indices = @transform_3, window_bounds = array<i64: 128, 128>}, {pipeline_mode = #tpu.pipeline_mode<synchronous>, transform_indices = @transform_4, window_bounds = array<i64: 1, 128>}, {transform_indices = @transform_5, window_bounds = array<i64: 16, 128>}]} {
    %c0_i32 = arith.constant 0 : i32
    %0 = arith.cmpi eq, %arg1, %c0_i32 : i32
    %1 = arith.extui %0 : i1 to i32
    %c0_i32_0 = arith.constant 0 : i32
    %2 = arith.cmpi ne, %1, %c0_i32_0 : i32
    scf.if %2 {
      %cst_16 = arith.constant 0.000000e+00 : f32
      %19 = vector.broadcast %cst_16 : f32 to vector<16x128xf32>
      %c0_17 = arith.constant 0 : index
      %c0_18 = arith.constant 0 : index
      %20 = vector.load %arg8[%c0_17, %c0_18] : memref<16x128xf32, #tpu.memory_space<vmem>>, vector<16x128xf32>
      tpu.vector_store %arg8[%c0_17, %c0_18], %19 {strides = array<i32>} : memref<16x128xf32, #tpu.memory_space<vmem>>, vector<16x128xf32>,
    } else {
    }
    %c0 = arith.constant 0 : index
    %c0_1 = arith.constant 0 : index
    %3 = vector.load %arg2[%c0, %c0_1] : memref<16x128xf32, #tpu.memory_space<vmem>>, vector<16x128xf32>
    %c0_2 = arith.constant 0 : index
    %c0_3 = arith.constant 0 : index
    %4 = vector.load %arg3[%c0_2, %c0_3] : memref<128x128xf32, #tpu.memory_space<vmem>>, vector<128x128xf32>
    %cst = arith.constant dense<0.000000e+00> : vector<16x128xf32>
    %5 = tpu.matmul %3, %4, %cst {dimension_numbers = #tpu.dot_dimension_numbers<[1], [0], [0], [1], [0, 0, 1, 1], [], []>} : vector<16x128xf32>, vector<128x128xf32>, vector<16x128xf32> -> vector<16x128xf32>
    %c0_4 = arith.constant 0 : index
    %c0_5 = arith.constant 0 : index
    %6 = vector.load %arg4[%c0_4, %c0_5] : memref<1x128xf32, #tpu.memory_space<vmem>>, vector<1x128xf32>
    %7 = vector.broadcast %6 : vector<1x128xf32> to vector<16x128xf32>
    %8 = arith.addf %5, %7 : vector<16x128xf32>
    %cst_6 = arith.constant 0.000000e+00 : f32
    %9 = vector.broadcast %cst_6 : f32 to vector<16x128xf32>
    %10 = arith.maximumf %8, %9 : vector<16x128xf32>
    %c0_7 = arith.constant 0 : index
    %c0_8 = arith.constant 0 : index
    %11 = vector.load %arg8[%c0_7, %c0_8] : memref<16x128xf32, #tpu.memory_space<vmem>>, vector<16x128xf32>
    %c0_9 = arith.constant 0 : index
    %c0_10 = arith.constant 0 : index
    %12 = vector.load %arg5[%c0_9, %c0_10] : memref<128x128xf32, #tpu.memory_space<vmem>>, vector<128x128xf32>
    %cst_11 = arith.constant dense<0.000000e+00> : vector<16x128xf32>
    %13 = tpu.matmul %10, %12, %cst_11 {dimension_numbers = #tpu.dot_dimension_numbers<[1], [0], [0], [1], [0, 0, 1, 1], [], []>} : vector<16x128xf32>, vector<128x128xf32>, vector<16x128xf32> -> vector<16x128xf32>
    %14 = arith.addf %11, %13 : vector<16x128xf32>
    %c0_12 = arith.constant 0 : index
    %c0_13 = arith.constant 0 : index
    %15 = vector.load %arg8[%c0_12, %c0_13] : memref<16x128xf32, #tpu.memory_space<vmem>>, vector<16x128xf32>
    tpu.vector_store %arg8[%c0_12, %c0_13], %14 {strides = array<i32>} : memref<16x128xf32, #tpu.memory_space<vmem>>, vector<16x128xf32>,
    %c0_i32_14 = arith.constant 0 : i32
    %16 = arith.cmpi eq, %arg1, %c0_i32_14 : i32
    %17 = arith.extui %16 : i1 to i32
    %c0_i32_15 = arith.constant 0 : i32
    %18 = arith.cmpi ne, %17, %c0_i32_15 : i32
    scf.if %18 {
      %c0_16 = arith.constant 0 : index
      %c0_17 = arith.constant 0 : index
      %19 = vector.load %arg8[%c0_16, %c0_17] : memref<16x128xf32, #tpu.memory_space<vmem>>, vector<16x128xf32>
      %c0_18 = arith.constant 0 : index
      %c0_19 = arith.constant 0 : index
      %20 = vector.load %arg6[%c0_18, %c0_19] : memref<1x128xf32, #tpu.memory_space<vmem>>, vector<1x128xf32>
      %21 = vector.broadcast %20 : vector<1x128xf32> to vector<16x128xf32>
      %22 = arith.addf %19, %21 : vector<16x128xf32>
      %c0_20 = arith.constant 0 : index
      %c0_21 = arith.constant 0 : index
      %23 = vector.load %arg7[%c0_20, %c0_21] : memref<16x128xf32, #tpu.memory_space<vmem>>, vector<16x128xf32>
      tpu.vector_store %arg7[%c0_20, %c0_21], %22 {strides = array<i32>} : memref<16x128xf32, #tpu.memory_space<vmem>>, vector<16x128xf32>,
    } else {
    }
    return
  }
  func.func @transform_0(%arg0: i32, %arg1: i32) -> (i32, i32) {
    %c0_i32 = arith.constant 0 : i32
    %c0_i32_0 = arith.constant 0 : i32
    return %arg0, %c0_i32 : i32, i32
  }
  func.func @transform_1(%arg0: i32, %arg1: i32) -> (i32, i32) {
    %c0_i32 = arith.constant 0 : i32
    %c0_i32_0 = arith.constant 0 : i32
    return %c0_i32, %arg1 : i32, i32
  }
  func.func @transform_2(%arg0: i32, %arg1: i32) -> (i32, i32) {
    %c0_i32 = arith.constant 0 : i32
    %c0_i32_0 = arith.constant 0 : i32
    return %c0_i32, %arg1 : i32, i32
  }
  func.func @transform_3(%arg0: i32, %arg1: i32) -> (i32, i32) {
    %c0_i32 = arith.constant 0 : i32
    %c0_i32_0 = arith.constant 0 : i32
    return %arg1, %c0_i32 : i32, i32
  }
  func.func @transform_4(%arg0: i32, %arg1: i32) -> (i32, i32) {
    %c0_i32 = arith.constant 0 : i32
    %c0_i32_0 = arith.constant 0 : i32
    %c0_i32_1 = arith.constant 0 : i32
    return %c0_i32, %c0_i32_0 : i32, i32
  }
  func.func @transform_5(%arg0: i32, %arg1: i32) -> (i32, i32) {
    %c0_i32 = arith.constant 0 : i32
    %c0_i32_0 = arith.constant 0 : i32
    return %arg0, %c0_i32 : i32, i32
  }
}

</mosaic_0001>

<llo_original>
// kernel: mlp_forward.1
$region0: #{mlp_forward.1}
  #allocation0 [shape = 'u32[]', space=smem, size = 0x4, offset = 0x4, fixed_abs, tag = 'smem constant byte address 0x4 - core index']
  #allocation1 [shape = 'u32[72,128]{1,0:T(1,128)}', space=vmem, size = 0x9000, scoped, tag = 'internal scratch']
  #allocation2 [shape = 'f32[16,128]{1,0:T(8,128)}', space=vmem, size = 0x2000, scoped, tag = 'scratch operand']
  %s0 = inlined_call_operand.vmem [shape: f32[16,128], index: 0, kind: input, shape index: {}]
  %s1 = inlined_call_operand.vmem [shape: f32[128,128], index: 1, kind: input, shape index: {}]
  %s2 = inlined_call_operand.vmem [shape: f32[1,128], index: 2, kind: input, shape index: {}]
  %s3 = inlined_call_operand.vmem [shape: f32[128,128], index: 3, kind: input, shape index: {}]
  %s4 = inlined_call_operand.vmem [shape: f32[1,128], index: 4, kind: input, shape index: {}]
  %s5 = inlined_call_operand.vmem [shape: f32[16,128], index: 5, kind: output, shape index: {}]
  %s6 = sld [smem:[#allocation0]]
  $region38: #{mlp_forward.1} parent=0
    _
  %s8 = ssub.s32 1, %s6
  %s9 = scalar_select 0, %s8, %s6
  // Predicated region
  $region2: #{mlp_forward.1} parent=0 // pred_check
    _
  $region3: #{mlp_forward.1} parent=0 // pred_check_branch
    %11 = sbr.rel (0) target = $region5
  $region4: #{mlp_forward.1} parent=0 // pred_region
    _
  $region5: #{mlp_forward.1} parent=0 // pred_fallthru
    _
  // Predicated region
  $region6: #{mlp_forward.1} parent=0 // pred_check
    _
  $region7: #{mlp_forward.1} parent=0 // pred_check_branch
    %13 = sbr.rel (0) target = $region9
  $region8: #{mlp_forward.1} parent=0 // pred_region
    _
  $region9: #{mlp_forward.1} parent=0 // pred_fallthru
    _
  // Predicated region
  $region10: #{mlp_forward.1} parent=0 // pred_check
    _
  $region11: #{mlp_forward.1} parent=0 // pred_check_branch
    %15 = sbr.rel (0) target = $region13
  $region12: #{mlp_forward.1} parent=0 // pred_region
    _
  $region13: #{mlp_forward.1} parent=0 // pred_fallthru
    _
  // Predicated region
  $region14: #{mlp_forward.1} parent=0 // pred_check
    _
  $region15: #{mlp_forward.1} parent=0 // pred_check_branch
    %17 = sbr.rel (0) target = $region17
  $region16: #{mlp_forward.1} parent=0 // pred_region
    _
  $region17: #{mlp_forward.1} parent=0 // pred_fallthru
    _
  // Predicated region
  $region18: #{mlp_forward.1} parent=0 // pred_check
    _
  $region19: #{mlp_forward.1} parent=0 // pred_check_branch
    %19 = sbr.rel (0) target = $region21
  $region20: #{mlp_forward.1} parent=0 // pred_region
    _
  $region21: #{mlp_forward.1} parent=0 // pred_fallthru
    _
  %p20 = scmp.eq.s32.totalorder 0, 0
  // Predicated region
  $region22: #{mlp_forward.1} parent=0 // pred_check
    %p21 = pneg %p20
  $region23: #{mlp_forward.1} parent=0 // pred_check_branch
    %23 = sbr.rel (%p21) target = $region25
  $region24: #{mlp_forward.1} parent=0 // pred_region
    %24 = vst [vmem:[#allocation2] sm:$0xff] 0.0
    %25 = vst [vmem:[#allocation2 + $0x8] sm:$0xff] 0.0
  $region25: #{mlp_forward.1} parent=0 // pred_fallthru
    _
  %v26 = vld [vmem:[%s0] sm:$0xff]
  %v27 = vld [vmem:[%s0 + $0x8] sm:$0xff]
  %v28 = vld [vmem:[%s1] sm:$0xff]
  %v29 = vld [vmem:[%s1 + $0x8] sm:$0xff]
  %v30 = vld [vmem:[%s1 + $0x10] sm:$0xff]
  %v31 = vld [vmem:[%s1 + $0x18] sm:$0xff]
  %v32 = vld [vmem:[%s1 + $0x20] sm:$0xff]
  %v33 = vld [vmem:[%s1 + $0x28] sm:$0xff]
  %v34 = vld [vmem:[%s1 + $0x30] sm:$0xff]
  %v35 = vld [vmem:[%s1 + $0x38] sm:$0xff]
  %v36 = vld [vmem:[%s1 + $0x40] sm:$0xff]
  %v37 = vld [vmem:[%s1 + $0x48] sm:$0xff]
  %v38 = vld [vmem:[%s1 + $0x50] sm:$0xff]
  %v39 = vld [vmem:[%s1 + $0x58] sm:$0xff]
  %v40 = vld [vmem:[%s1 + $0x60] sm:$0xff]
  %v41 = vld [vmem:[%s1 + $0x68] sm:$0xff]
  %v42 = vld [vmem:[%s1 + $0x70] sm:$0xff]
  %v43 = vld [vmem:[%s1 + $0x78] sm:$0xff]
  %v44 = vld [vmem:[%s2] sm:$0x1]
  %v46 = vperm.slane %v44, 0
  %48 = vmatpush.msra.mxu0 %v43
  %49 = vmatpush.msra.mxu0 %v42
  %50 = vmatpush.msra.mxu0 %v41
  %51 = vmatpush.msra.mxu0 %v40
  %52 = vmatpush.msra.mxu0 %v39
  %53 = vmatpush.msra.mxu0 %v38
  %54 = vmatpush.msra.mxu0 %v37
  %55 = vmatpush.msra.mxu0 %v36
  %56 = vmatpush.msra.mxu0 %v35
  %57 = vmatpush.msra.mxu0 %v34
  %58 = vmatpush.msra.mxu0 %v33
  %59 = vmatpush.msra.mxu0 %v32
  %60 = vmatpush.msra.mxu0 %v31
  %61 = vmatpush.msra.mxu0 %v30
  %62 = vmatpush.msra.mxu0 %v29
  %63 = vmatpush.msra.mxu0 %v28
  %64 = vmatmul.f32.gmra.mxu0 %v26
  %v65 = vpop.f32.mrf.mxu0
  %v66 = vadd.f32 %v46, %v65
  %67 = vmatmul.f32.gmra.mxu0 %v27
  %v68 = vpop.f32.mrf.mxu0
  %v69 = vadd.f32 %v46, %v68
  %70 = vdwg.mxu0
  %v71 = vmax.f32 %v66, 0.0
  %v72 = vmax.f32 %v69, 0.0
  %v73 = vld [vmem:[#allocation2] sm:$0xff]
  %v74 = vld [vmem:[#allocation2 + $0x8] sm:$0xff]
  %v75 = vld [vmem:[%s3] sm:$0xff]
  %v76 = vld [vmem:[%s3 + $0x8] sm:$0xff]
  %v77 = vld [vmem:[%s3 + $0x10] sm:$0xff]
  %v78 = vld [vmem:[%s3 + $0x18] sm:$0xff]
  %v79 = vld [vmem:[%s3 + $0x20] sm:$0xff]
  %v80 = vld [vmem:[%s3 + $0x28] sm:$0xff]
  %v81 = vld [vmem:[%s3 + $0x30] sm:$0xff]
  %v82 = vld [vmem:[%s3 + $0x38] sm:$0xff]
  %v83 = vld [vmem:[%s3 + $0x40] sm:$0xff]
  %v84 = vld [vmem:[%s3 + $0x48] sm:$0xff]
  %v85 = vld [vmem:[%s3 + $0x50] sm:$0xff]
  %v86 = vld [vmem:[%s3 + $0x58] sm:$0xff]
  %v87 = vld [vmem:[%s3 + $0x60] sm:$0xff]
  %v88 = vld [vmem:[%s3 + $0x68] sm:$0xff]
  %v89 = vld [vmem:[%s3 + $0x70] sm:$0xff]
  %v90 = vld [vmem:[%s3 + $0x78] sm:$0xff]
  %91 = vmatpush.msra.mxu0 %v90
  %92 = vmatpush.msra.mxu0 %v89
  %93 = vmatpush.msra.mxu0 %v88
  %94 = vmatpush.msra.mxu0 %v87
  %95 = vmatpush.msra.mxu0 %v86
  %96 = vmatpush.msra.mxu0 %v85
  %97 = vmatpush.msra.mxu0 %v84
  %98 = vmatpush.msra.mxu0 %v83
  %99 = vmatpush.msra.mxu0 %v82
  %100 = vmatpush.msra.mxu0 %v81
  %101 = vmatpush.msra.mxu0 %v80
  %102 = vmatpush.msra.mxu0 %v79
  %103 = vmatpush.msra.mxu0 %v78
  %104 = vmatpush.msra.mxu0 %v77
  %105 = vmatpush.msra.mxu0 %v76
  %106 = vmatpush.msra.mxu0 %v75
  %107 = vmatmul.f32.gmra.mxu0 %v71
  %v108 = vpop.f32.mrf.mxu0
  %v109 = vadd.f32 0.0, %v108
  %110 = vmatmul.f32.gmra.mxu0 %v72
  %v111 = vpop.f32.mrf.mxu0
  %v112 = vadd.f32 0.0, %v111
  %113 = vdwg.mxu0
  %v114 = vadd.f32 %v73, %v109
  %v115 = vadd.f32 %v74, %v112
  %116 = vst [vmem:[#allocation2] sm:$0xff] %v114
  %117 = vst [vmem:[#allocation2 + $0x8] sm:$0xff] %v115
  // Predicated region
  $region26: #{mlp_forward.1} parent=0 // pred_check
    %p118 = pneg %p20
  $region27: #{mlp_forward.1} parent=0 // pred_check_branch
    %120 = sbr.rel (%p118) target = $region29
  $region28: #{mlp_forward.1} parent=0 // pred_region
    %v121 = vld [vmem:[#allocation2] sm:$0xff]
    %v122 = vld [vmem:[#allocation2 + $0x8] sm:$0xff]
    %v123 = vld [vmem:[%s4] sm:$0x1]
    %v125 = vperm.slane %v123, 0
    %v127 = vadd.f32 %v121, %v125
    %v128 = vadd.f32 %v122, %v125
    %129 = vst [vmem:[%s5] sm:$0xff] %v127
    %130 = vst [vmem:[%s5 + $0x8] sm:$0xff] %v128
  $region29: #{mlp_forward.1} parent=0 // pred_fallthru
    _
  // Predicated region
  $region30: #{mlp_forward.1} parent=0 // pred_check
    _
  $region31: #{mlp_forward.1} parent=0 // pred_check_branch
    %132 = sbr.rel (0) target = $region33
  $region32: #{mlp_forward.1} parent=0 // pred_region
    _
  $region33: #{mlp_forward.1} parent=0 // pred_fallthru
    _
  // Predicated region
  $region34: #{mlp_forward.1} parent=0 // pred_check
    _
  $region35: #{mlp_forward.1} parent=0 // pred_check_branch
    %134 = sbr.rel (0) target = $region37
  $region36: #{mlp_forward.1} parent=0 // pred_region
    _
  $region37: #{mlp_forward.1} parent=0 // pred_fallthru
    _

</llo_original>
